<compile_context>
chip_gen: v7x
topology: tpu7x:2x2x1
jax: 0.10.0
libtpu: 0.0.40
codegen_flags: <defaults>
</compile_context>

<pallas_src>
import jax
import jax.numpy as jnp
from jax.experimental import pallas as pl
from jax.experimental.pallas import tpu as pltpu


# ----------------------------------------------------------------------------
# Fused kernel: two x (Linear -> BatchNorm2d(1) train-mode -> tanh)
#   circuit_in1 on the flattened state_input1, E_in1 on the flattened
#   state_input2.  BatchNorm2d(1) normalizes over ALL elements of each output
#   (channel dim is 1), with biased variance, eps=1e-5, gamma=1, beta=0.
# ----------------------------------------------------------------------------
def _fused_kernel(x1_ref, x2_ref, w1_ref, b1_ref, w2_ref, b2_ref,
                  h1_ref, h2_ref):
    eps = 1e-5

    # ---- branch 1: circuit_in1 on state_input1 ([B*max_depth, chip_size]) ----
    y1 = jnp.dot(x1_ref[...], w1_ref[...],
                 preferred_element_type=jnp.float32) + b1_ref[...]
    inv_n1 = 1.0 / float(y1.shape[0] * y1.shape[1])         # static constant
    m1 = jnp.sum(y1, keepdims=True) * inv_n1                 # [1, 1]
    v1 = jnp.sum(jnp.square(y1 - m1), keepdims=True) * inv_n1
    h1_ref[...] = jnp.tanh((y1 - m1) * jax.lax.rsqrt(v1 + eps)).astype(h1_ref.dtype)

    # ---- branch 2: E_in1 on state_input2 ([B, chip_size]) --------------------
    y2 = jnp.dot(x2_ref[...], w2_ref[...],
                 preferred_element_type=jnp.float32) + b2_ref[...]
    inv_n2 = 1.0 / float(y2.shape[0] * y2.shape[1])
    m2 = jnp.sum(y2, keepdims=True) * inv_n2
    v2 = jnp.sum(jnp.square(y2 - m2), keepdims=True) * inv_n2
    h2_ref[...] = jnp.tanh((y2 - m2) * jax.lax.rsqrt(v2 + eps)).astype(h2_ref.dtype)


# ----------------------------------------------------------------------------
# Parameter init (deterministic, PyTorch nn.Linear-style uniform init).
# Weight layout is [fan_in, fan_out] (transposed vs. torch's [out, in]).
# ----------------------------------------------------------------------------
def init_linear(key, fan_in, fan_out):
    kw, kb = jax.random.split(key)
    bound = 1.0 / (fan_in ** 0.5)
    w = jax.random.uniform(kw, (fan_in, fan_out), jnp.float32, -bound, bound)
    b = jax.random.uniform(kb, (fan_out,), jnp.float32, -bound, bound)
    return w, b


def init_net_params(key, chip_size, max_depth):
    k1, k2 = jax.random.split(key)
    return {
        "circuit_in1": init_linear(k1, chip_size, 4 * chip_size // 3),
        "E_in1": init_linear(k2, chip_size, 4 * chip_size // 3),
    }


# ----------------------------------------------------------------------------
# Net.forward equivalent
# ----------------------------------------------------------------------------
def net_forward(state, params):
    B, _, D, C = state.shape
    w1, b1 = params["circuit_in1"]
    w2, b2 = params["E_in1"]
    Cout = w1.shape[1]

    # Exactly what Net.forward computes: the two sliced intermediates.
    # Plain XLA slices — a dedicated Pallas split kernel would be pure launch
    # overhead for two sub-vreg copies.
    s1 = state[:, 0:1, :, :]        # state_input1 : [B, 1, max_depth, chip_size]
    s2 = state[:, 1:2, 0:1, :]      # state_input2 : [B, 1, 1, chip_size]

    # Flatten to the [rows, chip_size] views the Linear layers consume
    # (glue reshapes stay in plain JAX; chip_size stays the lane dim).
    x1 = s1.reshape(B * D, C)
    x2 = s2.reshape(B, C)

    # TODO(synk): the reference Net.forward returns None here and never invokes
    # its BatchLinear / residual layers; circuit_in1 / E_in1 are run as the
    # representative Linear+BatchNorm+tanh hot path the module defines.
    vmem = pl.BlockSpec(memory_space=pltpu.MemorySpace.VMEM)
    h1_flat, h2_flat = pl.pallas_call(
        _fused_kernel,
        out_shape=(
            jax.ShapeDtypeStruct((B * D, Cout), jnp.float32),
            jax.ShapeDtypeStruct((B, Cout), jnp.float32),
        ),
        in_specs=[vmem, vmem, vmem, vmem, vmem, vmem],
        out_specs=(vmem, vmem),
        # Gridless, single VMEM-resident block: any grid / extra buffering
        # would only add per-step overhead at these (<2 KB) sizes.
    )(x1, x2, w1, b1.reshape(1, Cout), w2, b2.reshape(1, Cout))

    h1 = h1_flat.reshape(B, 1, D, Cout)
    h2 = h2_flat.reshape(B, 1, 1, Cout)
    return s1, s2, h1, h2


if __name__ == "__main__":
    chip_size, max_depth, batch = 12, 8, 2
    key = jax.random.PRNGKey(0)
    kx, kp = jax.random.split(key)

    state = jax.random.normal(kx, (batch, 2, max_depth, chip_size), jnp.float32)
    params = init_net_params(kp, chip_size, max_depth)

    out = jax.jit(lambda s: net_forward(s, params))(state)
    jax.block_until_ready(out)

    s1, s2, h1, h2 = out
    assert s1.shape == (batch, 1, max_depth, chip_size)
    assert s2.shape == (batch, 1, 1, chip_size)
    assert h1.shape == (batch, 1, max_depth, 4 * chip_size // 3)
    assert h2.shape == (batch, 1, 1, 4 * chip_size // 3)
    assert bool(jnp.all(jnp.isfinite(h1))) and bool(jnp.all(jnp.isfinite(h2)))
    print("KERNEL_OK")
</pallas_src>

<mosaic_0001>
module attributes {stable_mosaic.version = 11 : i64} {
  func.func @_fused_kernel(%arg0: memref<16x12xf32, #tpu.memory_space<vmem>>, %arg1: memref<2x12xf32, #tpu.memory_space<vmem>>, %arg2: memref<12x16xf32, #tpu.memory_space<vmem>>, %arg3: memref<1x16xf32, #tpu.memory_space<vmem>>, %arg4: memref<12x16xf32, #tpu.memory_space<vmem>>, %arg5: memref<1x16xf32, #tpu.memory_space<vmem>>, %arg6: memref<16x16xf32, #tpu.memory_space<vmem>>, %arg7: memref<2x16xf32, #tpu.memory_space<vmem>>) attributes {dimension_semantics = [], scalar_prefetch = 0 : i64, scratch_operands = 0 : i64, tpu.core_type = #tpu.core_type<tc>} {
    %c0 = arith.constant 0 : index
    %c0_0 = arith.constant 0 : index
    %0 = vector.load %arg0[%c0, %c0_0] : memref<16x12xf32, #tpu.memory_space<vmem>>, vector<16x12xf32>
    %c0_1 = arith.constant 0 : index
    %c0_2 = arith.constant 0 : index
    %1 = vector.load %arg2[%c0_1, %c0_2] : memref<12x16xf32, #tpu.memory_space<vmem>>, vector<12x16xf32>
    %cst = arith.constant dense<0.000000e+00> : vector<16x16xf32>
    %2 = tpu.matmul %0, %1, %cst {dimension_numbers = #tpu.dot_dimension_numbers<[1], [0], [0], [1], [0, 0, 1, 1], [], []>} : vector<16x12xf32>, vector<12x16xf32>, vector<16x16xf32> -> vector<16x16xf32>
    %c0_3 = arith.constant 0 : index
    %c0_4 = arith.constant 0 : index
    %3 = vector.load %arg3[%c0_3, %c0_4] : memref<1x16xf32, #tpu.memory_space<vmem>>, vector<1x16xf32>
    %4 = vector.broadcast %3 : vector<1x16xf32> to vector<16x16xf32>
    %5 = arith.addf %2, %4 : vector<16x16xf32>
    %6 = vector.shape_cast %5 : vector<16x16xf32> to vector<1x16x16xf32>
    %cst_5 = arith.constant dense<0.000000e+00> : vector<1xf32>
    %7 = vector.multi_reduction <add>, %6, %cst_5 [1, 2] : vector<1x16x16xf32> to vector<1xf32>
    %8 = vector.shape_cast %7 : vector<1xf32> to vector<1x1x1xf32>
    %9 = vector.extract %8[0, 0, 0] : f32 from vector<1x1x1xf32>
    %10 = vector.broadcast %9 : f32 to vector<1x1xf32>
    %cst_6 = arith.constant 3.906250e-03 : f32
    %11 = vector.broadcast %cst_6 : f32 to vector<1x1xf32>
    %12 = arith.mulf %10, %11 : vector<1x1xf32>
    %13 = vector.broadcast %12 : vector<1x1xf32> to vector<16x16xf32>
    %14 = arith.subf %5, %13 : vector<16x16xf32>
    %15 = arith.mulf %14, %14 : vector<16x16xf32>
    %16 = vector.shape_cast %15 : vector<16x16xf32> to vector<1x16x16xf32>
    %cst_7 = arith.constant dense<0.000000e+00> : vector<1xf32>
    %17 = vector.multi_reduction <add>, %16, %cst_7 [1, 2] : vector<1x16x16xf32> to vector<1xf32>
    %18 = vector.shape_cast %17 : vector<1xf32> to vector<1x1x1xf32>
    %19 = vector.extract %18[0, 0, 0] : f32 from vector<1x1x1xf32>
    %20 = vector.broadcast %19 : f32 to vector<1x1xf32>
    %cst_8 = arith.constant 3.906250e-03 : f32
    %21 = vector.broadcast %cst_8 : f32 to vector<1x1xf32>
    %22 = arith.mulf %20, %21 : vector<1x1xf32>
    %23 = vector.broadcast %12 : vector<1x1xf32> to vector<16x16xf32>
    %24 = arith.subf %5, %23 : vector<16x16xf32>
    %cst_9 = arith.constant 9.99999974E-6 : f32
    %25 = vector.broadcast %cst_9 : f32 to vector<1x1xf32>
    %26 = arith.addf %22, %25 : vector<1x1xf32>
    %27 = math.rsqrt %26 : vector<1x1xf32>
    %28 = vector.broadcast %27 : vector<1x1xf32> to vector<16x16xf32>
    %29 = arith.mulf %24, %28 : vector<16x16xf32>
    %30 = math.tanh %29 : vector<16x16xf32>
    %c0_10 = arith.constant 0 : index
    %c0_11 = arith.constant 0 : index
    %31 = vector.load %arg6[%c0_10, %c0_11] : memref<16x16xf32, #tpu.memory_space<vmem>>, vector<16x16xf32>
    tpu.vector_store %arg6[%c0_10, %c0_11], %30 {strides = array<i32>} : memref<16x16xf32, #tpu.memory_space<vmem>>, vector<16x16xf32>,
    %c0_12 = arith.constant 0 : index
    %c0_13 = arith.constant 0 : index
    %32 = vector.load %arg1[%c0_12, %c0_13] : memref<2x12xf32, #tpu.memory_space<vmem>>, vector<2x12xf32>
    %c0_14 = arith.constant 0 : index
    %c0_15 = arith.constant 0 : index
    %33 = vector.load %arg4[%c0_14, %c0_15] : memref<12x16xf32, #tpu.memory_space<vmem>>, vector<12x16xf32>
    %cst_16 = arith.constant dense<0.000000e+00> : vector<2x16xf32>
    %34 = tpu.matmul %32, %33, %cst_16 {dimension_numbers = #tpu.dot_dimension_numbers<[1], [0], [0], [1], [0, 0, 1, 1], [], []>} : vector<2x12xf32>, vector<12x16xf32>, vector<2x16xf32> -> vector<2x16xf32>
    %c0_17 = arith.constant 0 : index
    %c0_18 = arith.constant 0 : index
    %35 = vector.load %arg5[%c0_17, %c0_18] : memref<1x16xf32, #tpu.memory_space<vmem>>, vector<1x16xf32>
    %36 = vector.broadcast %35 : vector<1x16xf32> to vector<2x16xf32>
    %37 = arith.addf %34, %36 : vector<2x16xf32>
    %38 = vector.shape_cast %37 : vector<2x16xf32> to vector<1x2x16xf32>
    %cst_19 = arith.constant dense<0.000000e+00> : vector<1xf32>
    %39 = vector.multi_reduction <add>, %38, %cst_19 [1, 2] : vector<1x2x16xf32> to vector<1xf32>
    %40 = vector.shape_cast %39 : vector<1xf32> to vector<1x1x1xf32>
    %41 = vector.extract %40[0, 0, 0] : f32 from vector<1x1x1xf32>
    %42 = vector.broadcast %41 : f32 to vector<1x1xf32>
    %cst_20 = arith.constant 3.125000e-02 : f32
    %43 = vector.broadcast %cst_20 : f32 to vector<1x1xf32>
    %44 = arith.mulf %42, %43 : vector<1x1xf32>
    %45 = vector.broadcast %44 : vector<1x1xf32> to vector<2x16xf32>
    %46 = arith.subf %37, %45 : vector<2x16xf32>
    %47 = arith.mulf %46, %46 : vector<2x16xf32>
    %48 = vector.shape_cast %47 : vector<2x16xf32> to vector<1x2x16xf32>
    %cst_21 = arith.constant dense<0.000000e+00> : vector<1xf32>
    %49 = vector.multi_reduction <add>, %48, %cst_21 [1, 2] : vector<1x2x16xf32> to vector<1xf32>
    %50 = vector.shape_cast %49 : vector<1xf32> to vector<1x1x1xf32>
    %51 = vector.extract %50[0, 0, 0] : f32 from vector<1x1x1xf32>
    %52 = vector.broadcast %51 : f32 to vector<1x1xf32>
    %cst_22 = arith.constant 3.125000e-02 : f32
    %53 = vector.broadcast %cst_22 : f32 to vector<1x1xf32>
    %54 = arith.mulf %52, %53 : vector<1x1xf32>
    %55 = vector.broadcast %44 : vector<1x1xf32> to vector<2x16xf32>
    %56 = arith.subf %37, %55 : vector<2x16xf32>
    %cst_23 = arith.constant 9.99999974E-6 : f32
    %57 = vector.broadcast %cst_23 : f32 to vector<1x1xf32>
    %58 = arith.addf %54, %57 : vector<1x1xf32>
    %59 = math.rsqrt %58 : vector<1x1xf32>
    %60 = vector.broadcast %59 : vector<1x1xf32> to vector<2x16xf32>
    %61 = arith.mulf %56, %60 : vector<2x16xf32>
    %62 = math.tanh %61 : vector<2x16xf32>
    %c0_24 = arith.constant 0 : index
    %c0_25 = arith.constant 0 : index
    %63 = vector.load %arg7[%c0_24, %c0_25] : memref<2x16xf32, #tpu.memory_space<vmem>>, vector<2x16xf32>
    tpu.vector_store %arg7[%c0_24, %c0_25], %62 {strides = array<i32>} : memref<2x16xf32, #tpu.memory_space<vmem>>, vector<2x16xf32>,
    return
  }
}

</mosaic_0001>

<llo_original>
// kernel: _lambda_.1
$region0: #{_lambda_.1}
  #allocation0 [shape = 'u32[]', space=smem, size = 0x4, offset = 0x4, fixed_abs, tag = 'smem constant byte address 0x4 - core index']
  #allocation1 [shape = 'u32[144,128]{1,0:T(1,128)}', space=vmem, size = 0x12000, scoped, tag = 'internal scratch']
  %s0 = inlined_call_operand.vmem [shape: f32[16,12], index: 0, kind: input, shape index: {}]
  %s1 = inlined_call_operand.vmem [shape: f32[2,12], index: 1, kind: input, shape index: {}]
  %s2 = inlined_call_operand.vmem [shape: f32[12,16], index: 2, kind: input, shape index: {}]
  %s3 = inlined_call_operand.vmem [shape: f32[1,16], index: 3, kind: input, shape index: {}]
  %s4 = inlined_call_operand.vmem [shape: f32[12,16], index: 4, kind: input, shape index: {}]
  %s5 = inlined_call_operand.vmem [shape: f32[1,16], index: 5, kind: input, shape index: {}]
  %s6 = inlined_call_operand.hbm [shape: f32[16,16], index: 6, kind: output, shape index: {0}]
  %s7 = inlined_call_operand.hbm [shape: f32[2,16], index: 7, kind: output, shape index: {1}]
  %8 = xla_tuple %s6, %s7
  %s9 = sld [smem:[#allocation0]]
  $region42: #{_lambda_.1} parent=0
    _
  %s11 = ssub.s32 1, %s9
  %s12 = scalar_select 0, %s11, %s9
  $region1: #{_lambda_.1} parent=0
    #allocation2 [shape = 'u8[8192]{0}', space=vmem, size = 0x2000, scoped, tag = 'output window, operand 0, single buffered']
    #allocation3 [shape = 's32[1]{0}', space=sflag, size = 0x4, scoped, tag = 'scoped memory for _lambda_.1']
    #allocation4 [shape = 'u8[1024]{0}', space=vmem, size = 0x400, scoped, tag = 'output window, operand 1, single buffered']
    #allocation5 [shape = 's32[1]{0}', space=sflag, size = 0x4, scoped, tag = 'scoped memory for _lambda_.1']
    %13 = vsyncpa [#allocation3], 0
    %14 = vsyncpa [#allocation5], 0
    // Predicated region
    $region2: #{_lambda_.1} parent=1 // pred_check
      _
    $region3: #{_lambda_.1} parent=1 // pred_check_branch
      %16 = sbr.rel (0) target = $region5
    $region4: #{_lambda_.1} parent=1 // pred_region
      _
    $region5: #{_lambda_.1} parent=1 // pred_fallthru
      _
    // Predicated region
    $region6: #{_lambda_.1} parent=1 // pred_check
      _
    $region7: #{_lambda_.1} parent=1 // pred_check_branch
      %18 = sbr.rel (0) target = $region9
    $region8: #{_lambda_.1} parent=1 // pred_region
      _
    $region9: #{_lambda_.1} parent=1 // pred_fallthru
      _
    // Predicated region
    $region10: #{_lambda_.1} parent=1 // pred_check
      _
    $region11: #{_lambda_.1} parent=1 // pred_check_branch
      %20 = sbr.rel (0) target = $region13
    $region12: #{_lambda_.1} parent=1 // pred_region
      _
    $region13: #{_lambda_.1} parent=1 // pred_fallthru
      _
    // Predicated region
    $region14: #{_lambda_.1} parent=1 // pred_check
      _
    $region15: #{_lambda_.1} parent=1 // pred_check_branch
      %22 = sbr.rel (0) target = $region17
    $region16: #{_lambda_.1} parent=1 // pred_region
      _
    $region17: #{_lambda_.1} parent=1 // pred_fallthru
      _
    // Predicated region
    $region18: #{_lambda_.1} parent=1 // pred_check
      _
    $region19: #{_lambda_.1} parent=1 // pred_check_branch
      %24 = sbr.rel (0) target = $region21
    $region20: #{_lambda_.1} parent=1 // pred_region
      _
    $region21: #{_lambda_.1} parent=1 // pred_fallthru
      _
    // Predicated region
    $region22: #{_lambda_.1} parent=1 // pred_check
      _
    $region23: #{_lambda_.1} parent=1 // pred_check_branch
      %26 = sbr.rel (0) target = $region25
    $region24: #{_lambda_.1} parent=1 // pred_region
      _
    $region25: #{_lambda_.1} parent=1 // pred_fallthru
      _
    %v27 = vld [vmem:[%s0] sm:$0xff]
    %v28 = vld [vmem:[%s0 + $0x8] sm:$0xff]
    %v29 = vld [vmem:[%s2] sm:$0xff]
    %v30 = vld [vmem:[%s2 + $0x8] sm:$0xf]
    %v31 = vld [vmem:[%s3] sm:$0x1]
    %v33 = vlaneseq
    %v34 = vshrl.u32 %v33, 7
    %v35 = vsub.s32 0, %v34
    %v36 = vrot.slane %v31, %v35
    %vm38 = vcmask 97280
    %v40 = vsel %vm38, %v27, 0
    %v43 = vsel %vm38, %v28, 0
    %vm45 = vcmask 1043456
    %v47 = vsel %vm45, %v30, 0
    %49 = vmatprep.subr.mxu0 0.0
    %50 = vmatpush1.msra.mxu0 %v29
    %51 = vmatprep.subr.mxu0 0.0
    %52 = vmatpush1.msra.mxu0 %v47
    %53 = vmatprep.subr.mxu0 0.0
    %54 = vmatpush1.msra.mxu0 0.0
    %55 = vmatprep.subr.mxu0 0.0
    %56 = vmatpush1.msra.mxu0 0.0
    %57 = vmatprep.subr.mxu0 0.0
    %58 = vmatpush1.msra.mxu0 0.0
    %59 = vmatprep.subr.mxu0 0.0
    %60 = vmatpush1.msra.mxu0 0.0
    %61 = vmatprep.subr.mxu0 0.0
    %62 = vmatpush1.msra.mxu0 0.0
    %63 = vmatprep.subr.mxu0 0.0
    %64 = vmatpush1.msra.mxu0 0.0
    %65 = vmatprep.subr.mxu0 0.0
    %66 = vmatpush1.msra.mxu0 0.0
    %67 = vmatprep.subr.mxu0 0.0
    %68 = vmatpush1.msra.mxu0 0.0
    %69 = vmatprep.subr.mxu0 0.0
    %70 = vmatpush1.msra.mxu0 0.0
    %71 = vmatprep.subr.mxu0 0.0
    %72 = vmatpush1.msra.mxu0 0.0
    %73 = vmatprep.subr.mxu0 0.0
    %74 = vmatpush1.msra.mxu0 0.0
    %75 = vmatprep.subr.mxu0 0.0
    %76 = vmatpush1.msra.mxu0 0.0
    %77 = vmatprep.subr.mxu0 0.0
    %78 = vmatpush1.msra.mxu0 0.0
    %79 = vmatprep.subr.mxu0 0.0
    %80 = vmatpush1.msra.mxu0 0.0
    %81 = vmatprep.subr.mxu0 0.0
    %82 = vmatpush1.msra.mxu0 0.0
    %83 = vmatprep.subr.mxu0 0.0
    %84 = vmatpush1.msra.mxu0 0.0
    %85 = vmatprep.subr.mxu0 0.0
    %86 = vmatpush1.msra.mxu0 0.0
    %87 = vmatprep.subr.mxu0 0.0
    %88 = vmatpush1.msra.mxu0 0.0
    %89 = vmatprep.subr.mxu0 0.0
    %90 = vmatpush1.msra.mxu0 0.0
    %91 = vmatprep.subr.mxu0 0.0
    %92 = vmatpush1.msra.mxu0 0.0
    %93 = vmatprep.subr.mxu0 0.0
    %94 = vmatpush1.msra.mxu0 0.0
    %95 = vmatprep.subr.mxu0 0.0
    %96 = vmatpush1.msra.mxu0 0.0
    %97 = vmatprep.subr.mxu0 0.0
    %98 = vmatpush1.msra.mxu0 0.0
    %99 = vmatprep.subr.mxu0 0.0
    %100 = vmatpush1.msra.mxu0 0.0
    %101 = vmatprep.subr.mxu0 0.0
    %102 = vmatpush1.msra.mxu0 0.0
    %103 = vmatprep.subr.mxu0 0.0
    %104 = vmatpush1.msra.mxu0 0.0
    %105 = vmatprep.subr.mxu0 0.0
    %106 = vmatpush1.msra.mxu0 0.0
    %107 = vmatprep.subr.mxu0 0.0
    %108 = vmatpush1.msra.mxu0 0.0
    %109 = vmatprep.subr.mxu0 0.0
    %110 = vmatpush1.msra.mxu0 0.0
    %111 = vmatprep.subr.mxu0 0.0
    %112 = vmatpush1.msra.mxu0 0.0
    %113 = vmatprep.mubr.f32.mxu0 0.0
    %114 = vmatmul.mubr.f32.gmra.mrb[0].mxu0 %v40
    %v115 = vpop.f32.mrb[0].mxu0
    %v116 = vadd.f32 %v36, %v115
    %v117 = vpop.f32.mrb[0].mxu0
    %118 = vmatprep.mubr.f32.mxu0 0.0
    %119 = vmatmul.mubr.f32.gmra.mrb[0].mxu0 %v43
    %v120 = vpop.f32.mrb[0].mxu0
    %v121 = vadd.f32 %v36, %v120
    %v122 = vpop.f32.mrb[0].mxu0
    %123 = vdwg.mxu0
    %vm124 = vcmask 130048
    %v125 = vsel %vm124, %v116, 0.0
    %v126 = vsel %vm124, %v121, 0.0
    %v127 = vadd.f32 %v125, %v126
    %128 = vadd.xlane.f32.xlu0 %v127
    %v129 = vpop.xlane.xlu0 %128
    %v130 = vrot.slane %v129, 4
    %v131 = vadd.f32 %v129, %v130
    %v132 = vrot.slane %v131, 2
    %v133 = vadd.f32 %v131, %v132
    %v134 = vrot.slane %v133, 1
    %v135 = vadd.f32 %v133, %v134
    %s136 = vtos %v135
    %v137 = vstv %s136
    %v138 = vmul.f32 %v137, 0.00390625
    %v139 = vsub.f32 %v116, %v138
    %v140 = vsub.f32 %v121, %v138
    %v141 = vmul.f32 %v139, %v139
    %v142 = vmul.f32 %v140, %v140
    %v143 = vsel %vm124, %v141, 0.0
    %v144 = vsel %vm124, %v142, 0.0
    %v145 = vadd.f32 %v143, %v144
    %146 = vadd.xlane.f32.xlu0 %v145
    %v147 = vpop.xlane.xlu0 %146
    %v148 = vrot.slane %v147, 4
    %v149 = vadd.f32 %v147, %v148
    %v150 = vrot.slane %v149, 2
    %v151 = vadd.f32 %v149, %v150
    %v152 = vrot.slane %v151, 1
    %v153 = vadd.f32 %v151, %v152
    %s154 = vtos %v153
    %v155 = vstv %s154
    %v156 = vmul.f32 %v155, 0.00390625
    %v157 = vadd.f32 %v156, 1e-05
    %v158 = vrsqrt.pop %v157
    %v159 = vmul.f32 %v139, %v158
    %v160 = vmul.f32 %v140, %v158
    %v161 = vtanh.pop %v159
    %v162 = vtanh.pop %v160
    %163 = vst.msk [vmem:[#allocation2] sm:$0xff] %vm124, %v161
    %164 = vst.msk [vmem:[#allocation2 + $0x8] sm:$0xff] %vm124, %v162
    %v165 = vld [vmem:[%s1] sm:$0x3]
    %v166 = vld [vmem:[%s4] sm:$0xff]
    %v167 = vld [vmem:[%s4 + $0x8] sm:$0xf]
    %v168 = vld [vmem:[%s5] sm:$0x1]
    %v170 = vlaneseq
    %v171 = vshrl.u32 %v170, 7
    %v172 = vsub.s32 0, %v171
    %v173 = vrot.slane %v168, %v172
    %v176 = vsel %vm38, %v165, 0
    %v179 = vsel %vm45, %v167, 0
    %181 = vmatprep.subr.mxu0 0.0
    %182 = vmatpush1.msra.mxu0 %v166
    %183 = vmatprep.subr.mxu0 0.0
    %184 = vmatpush1.msra.mxu0 %v179
    %185 = vmatprep.subr.mxu0 0.0
    %186 = vmatpush1.msra.mxu0 0.0
    %187 = vmatprep.subr.mxu0 0.0
    %188 = vmatpush1.msra.mxu0 0.0
    %189 = vmatprep.subr.mxu0 0.0
    %190 = vmatpush1.msra.mxu0 0.0
    %191 = vmatprep.subr.mxu0 0.0
    %192 = vmatpush1.msra.mxu0 0.0
    %193 = vmatprep.subr.mxu0 0.0
    %194 = vmatpush1.msra.mxu0 0.0
    %195 = vmatprep.subr.mxu0 0.0
    %196 = vmatpush1.msra.mxu0 0.0
    %197 = vmatprep.subr.mxu0 0.0
    %198 = vmatpush1.msra.mxu0 0.0
    %199 = vmatprep.subr.mxu0 0.0
    %200 = vmatpush1.msra.mxu0 0.0
    %201 = vmatprep.subr.mxu0 0.0
    %202 = vmatpush1.msra.mxu0 0.0
    %203 = vmatprep.subr.mxu0 0.0
    %204 = vmatpush1.msra.mxu0 0.0
    %205 = vmatprep.subr.mxu0 0.0
    %206 = vmatpush1.msra.mxu0 0.0
    %207 = vmatprep.subr.mxu0 0.0
    %208 = vmatpush1.msra.mxu0 0.0
    %209 = vmatprep.subr.mxu0 0.0
    %210 = vmatpush1.msra.mxu0 0.0
    %211 = vmatprep.subr.mxu0 0.0
    %212 = vmatpush1.msra.mxu0 0.0
    %213 = vmatprep.subr.mxu0 0.0
    %214 = vmatpush1.msra.mxu0 0.0
    %215 = vmatprep.subr.mxu0 0.0
    %216 = vmatpush1.msra.mxu0 0.0
    %217 = vmatprep.subr.mxu0 0.0
    %218 = vmatpush1.msra.mxu0 0.0
    %219 = vmatprep.subr.mxu0 0.0
    %220 = vmatpush1.msra.mxu0 0.0
    %221 = vmatprep.subr.mxu0 0.0
    %222 = vmatpush1.msra.mxu0 0.0
    %223 = vmatprep.subr.mxu0 0.0
    %224 = vmatpush1.msra.mxu0 0.0
    %225 = vmatprep.subr.mxu0 0.0
    %226 = vmatpush1.msra.mxu0 0.0
    %227 = vmatprep.subr.mxu0 0.0
    %228 = vmatpush1.msra.mxu0 0.0
    %229 = vmatprep.subr.mxu0 0.0
    %230 = vmatpush1.msra.mxu0 0.0
    %231 = vmatprep.subr.mxu0 0.0
    %232 = vmatpush1.msra.mxu0 0.0
    %233 = vmatprep.subr.mxu0 0.0
    %234 = vmatpush1.msra.mxu0 0.0
    %235 = vmatprep.subr.mxu0 0.0
    %236 = vmatpush1.msra.mxu0 0.0
    %237 = vmatprep.subr.mxu0 0.0
    %238 = vmatpush1.msra.mxu0 0.0
    %239 = vmatprep.subr.mxu0 0.0
    %240 = vmatpush1.msra.mxu0 0.0
    %241 = vmatprep.subr.mxu0 0.0
    %242 = vmatpush1.msra.mxu0 0.0
    %243 = vmatprep.subr.mxu0 0.0
    %244 = vmatpush1.msra.mxu0 0.0
    %245 = vmatprep.mubr.f32.mxu0 0.0
    %246 = vmatmul.mubr.f32.gmra.mrb[0].mxu0 %v176
    %v247 = vpop.f32.mrb[0].mxu0
    %v248 = vadd.f32 %v173, %v247
    %v249 = vpop.f32.mrb[0].mxu0
    %250 = vdwg.mxu0
    %vm251 = vcmask 123904
    %v252 = vsel %vm251, %v248, 0.0
    %253 = vadd.xlane.f32.xlu0 %v252
    %v254 = vpop.xlane.xlu0 %253
    %v255 = vrot.slane %v254, 4
    %v256 = vadd.f32 %v254, %v255
    %v257 = vrot.slane %v256, 2
    %v258 = vadd.f32 %v256, %v257
    %v259 = vrot.slane %v258, 1
    %v260 = vadd.f32 %v258, %v259
    %s261 = vtos %v260
    %v262 = vstv %s261
    %v263 = vmul.f32 %v262, 0.03125
    %v264 = vsub.f32 %v248, %v263
    %v265 = vmul.f32 %v264, %v264
    %v266 = vsel %vm251, %v265, 0.0
    %267 = vadd.xlane.f32.xlu0 %v266
    %v268 = vpop.xlane.xlu0 %267
    %v269 = vrot.slane %v268, 4
    %v270 = vadd.f32 %v268, %v269
    %v271 = vrot.slane %v270, 2
    %v272 = vadd.f32 %v270, %v271
    %v273 = vrot.slane %v272, 1
    %v274 = vadd.f32 %v272, %v273
    %s275 = vtos %v274
    %v276 = vstv %s275
    %v277 = vmul.f32 %v276, 0.03125
    %v278 = vadd.f32 %v277, 1e-05
    %v279 = vrsqrt.pop %v278
    %v280 = vmul.f32 %v264, %v279
    %v281 = vtanh.pop %v280
    %282 = vst.msk [vmem:[#allocation4] sm:$0x3] %vm251, %v281
    // Predicated region
    $region26: #{_lambda_.1} parent=1 // pred_check
      _
    $region27: #{_lambda_.1} parent=1 // pred_check_branch
      %284 = sbr.rel (0) target = $region29
    $region28: #{_lambda_.1} parent=1 // pred_region
      %s286 = ssub.s32 256, 256
      %287 = vsyncadd [#allocation3], %s286
      %s288 = sshll.u32 [#allocation2], 4
      %s289 = int_to_ptr.vmem [resolvable:$true] %s288
      %294 = dma.vmem_to_hbm [thread:$0]  %s289, 256, %s6, [#allocation3], 128, 128, 8
    $region29: #{_lambda_.1} parent=1 // pred_fallthru
      _
    // Predicated region
    $region30: #{_lambda_.1} parent=1 // pred_check
      _
    $region31: #{_lambda_.1} parent=1 // pred_check_branch
      %296 = sbr.rel (0) target = $region33
    $region32: #{_lambda_.1} parent=1 // pred_region
      %s298 = ssub.s32 32, 32
      %299 = vsyncadd [#allocation5], %s298
      %s301 = sshll.u32 [#allocation4], 4
      %s302 = int_to_ptr.vmem [resolvable:$true] %s301
      %304 = dma.vmem_to_hbm [thread:$0]  %s302, 32, %s7, [#allocation5]
    $region33: #{_lambda_.1} parent=1 // pred_fallthru
      _
    // Predicated region
    $region34: #{_lambda_.1} parent=1 // pred_check
      _
    $region35: #{_lambda_.1} parent=1 // pred_check_branch
      %306 = sbr.rel (0) target = $region37
    $region36: #{_lambda_.1} parent=1 // pred_region
      %307 = dma.done [#allocation3], 256
    $region37: #{_lambda_.1} parent=1 // pred_fallthru
      _
    // Predicated region
    $region38: #{_lambda_.1} parent=1 // pred_check
      _
    $region39: #{_lambda_.1} parent=1 // pred_check_branch
      %309 = sbr.rel (0) target = $region41
    $region40: #{_lambda_.1} parent=1 // pred_region
      %310 = dma.done [#allocation5], 32
    $region41: #{_lambda_.1} parent=1 // pred_fallthru
      _
    %311 = vsyncpa [#allocation3], 1
    %312 = vsyncpa [#allocation5], 1

</llo_original>
